<compile_context>
chip_gen: v7x
topology: tpu7x:2x2x1
jax: 0.10.0
libtpu: 0.0.40
codegen_flags: <defaults>
</compile_context>

<pallas_src>
import jax
import jax.numpy as jnp
import numpy as np
from jax.experimental import pallas as pl
from jax.experimental.pallas import tpu as pltpu


def _round_up(x: int, m: int) -> int:
    return ((x + m - 1) // m) * m


def _vmem_capacity_bytes() -> int:
    """Detected per-core VMEM capacity; conservative fallback if unavailable."""
    try:
        return int(pltpu.get_tpu_info().vmem_capacity_bytes)
    except Exception:
        return 64 << 20  # v7x per-TensorCore physical VMEM (most restrictive)


# ---------------------------------------------------------------------------
# Phase 1: conv (single folded matmul) + bias + ReLU + per-tile BN partials.
# ---------------------------------------------------------------------------
def _make_conv_relu_stats_kernel(m_valid: int, m_pad: int, tm: int):
    """Returns the phase-1 kernel, closing over the valid-row count so padded
    rows (m_valid <= row < m_pad) are excluded from the BN statistics."""
    need_mask = (m_pad != m_valid)

    def kernel(x_ref, w_ref, b_ref, y_ref, st_ref):
        # x_ref : (TM, K*C_in) bf16   im2col rows for this tile
        # w_ref : (K*C_in, Cp) bf16   folded conv weight (row = k*C_in + c_in)
        # b_ref : (1, Cp)      f32    conv bias (channel-padded)
        # y_ref : (TM, Cp)     bf16   conv+ReLU activation (lane-dense)
        # st_ref: (8, Cp)      f32    rows 0-3 = per-tile sum, rows 4-7 = sumsq
        acc = jnp.dot(x_ref[...], w_ref[...],
                      preferred_element_type=jnp.float32)
        y = jnp.maximum(acc + b_ref[...], 0.0)       # bias + ReLU in one pass
        yb = y.astype(y_ref.dtype)                   # bf16 intermediate stream
        y_ref[...] = yb

        # BN stats are computed on the *stored* (bf16-rounded) activation so
        # normalization in phase 2 is exactly self-consistent.
        yf = yb.astype(jnp.float32)
        if need_mask:
            rows = (pl.program_id(0) * tm
                    + jax.lax.broadcasted_iota(jnp.int32, yf.shape, 0))
            yf = jnp.where(rows < m_valid, yf, 0.0)

        s = jnp.sum(yf, axis=0, keepdims=True)        # (1, Cp)
        ss = jnp.sum(yf * yf, axis=0, keepdims=True)  # (1, Cp)
        ridx = jax.lax.broadcasted_iota(jnp.int32, st_ref.shape, 0)
        st_ref[...] = jnp.where(ridx < 4,
                                jnp.broadcast_to(s, st_ref.shape),
                                jnp.broadcast_to(ss, st_ref.shape))

    return kernel


# ---------------------------------------------------------------------------
# Phase 2: fused BN affine   out = y * scale + shift   (single FMA pass).
# ---------------------------------------------------------------------------
def _bn_affine_kernel(y_ref, scale_ref, shift_ref, o_ref):
    o_ref[...] = (y_ref[...].astype(jnp.float32) * scale_ref[...]
                  + shift_ref[...])


def conv1d_relu_bn(x_ncl, weight, bias, gamma, beta, *,
                   padding=0, dilation=1, eps=1e-5):
    """x_ncl : (N, C_in, L)    [PyTorch Conv1d layout]
       weight: (C_out, C_in, K), bias/gamma/beta: (C_out,)
       returns (N, C_out, L_out), matching nn.Conv1d -> ReLU -> BatchNorm1d
       with training-mode (biased, batch) statistics.  stride=1 only."""
    N, C_in, L = x_ncl.shape
    C_out, _, K = weight.shape
    L_out = L + 2 * padding - dilation * (K - 1)
    # TODO(synk): stride > 1 not implemented (module is used with stride=1).

    Cp = _round_up(C_out, 128)          # lane-dense output channels
    KC = K * C_in
    M = N * L_out

    # ---- per-generation tiling / VMEM budget ----
    vmem_cap = _vmem_capacity_bytes()
    big_vmem = vmem_cap >= (96 << 20)   # v5e/v6e (128 MiB) vs v7x (64 MiB)
    tm_cap = 1024 if big_vmem else 512  # v7x: keep grid splittable over 2 TCs
    vmem_limit = int(min(vmem_cap * 0.7, 100 << 20))

    m8 = _round_up(max(M, 8), 8)
    TM = m8 if m8 <= tm_cap else tm_cap
    M_pad = _round_up(M, TM)
    G = M_pad // TM

    # Phase-2 row tile: pure FMA pass with tiny footprint -> bigger blocks.
    TM2 = TM
    d_max = max(1, 2048 // TM)
    for d in range(min(G, d_max), 0, -1):
        if G % d == 0:
            TM2 = TM * d
            break
    G2 = M_pad // TM2

    # ---- wrapper-side layout prep: NCL -> NLC, pad L, fold the K taps once ----
    # TODO(synk): for stacked ECAPA layers, keep activations in (M, C) layout
    # between layers to avoid re-materializing im2col and NCL<->NLC transposes.
    x_nlc = jnp.transpose(x_ncl, (0, 2, 1)).astype(jnp.bfloat16)       # (N, L, C_in)
    x_padL = jnp.pad(x_nlc, ((0, 0), (padding, padding), (0, 0)))
    taps = [x_padL[:, k * dilation:k * dilation + L_out, :] for k in range(K)]
    x_im2col = jnp.concatenate(taps, axis=-1).reshape(M, KC)           # (M, K*C_in)
    if M_pad != M:
        x_im2col = jnp.pad(x_im2col, ((0, M_pad - M), (0, 0)))

    # Folded weight: row index = k*C_in + c_in  (matches im2col lane order).
    w2 = jnp.transpose(weight, (2, 1, 0)).reshape(KC, C_out)
    w2 = jnp.pad(w2, ((0, 0), (0, Cp - C_out))).astype(jnp.bfloat16)   # (KC, Cp)
    b2 = jnp.pad(bias.astype(jnp.float32), (0, Cp - C_out)).reshape(1, Cp)
    g1 = jnp.pad(gamma.astype(jnp.float32), (0, Cp - C_out))
    be1 = jnp.pad(beta.astype(jnp.float32), (0, Cp - C_out))

    # ---- phase 1: conv + ReLU + per-tile packed channel sum / sumsq ----
    kernel1 = _make_conv_relu_stats_kernel(M, M_pad, TM)
    y, stats = pl.pallas_call(
        kernel1,
        grid=(G,),
        in_specs=[
            pl.BlockSpec((TM, KC), lambda i: (i, 0)),
            pl.BlockSpec((KC, Cp), lambda i: (0, 0),
                         pipeline_mode=pl.Buffered(1)),
            pl.BlockSpec((1, Cp), lambda i: (0, 0),
                         pipeline_mode=pl.Buffered(1)),
        ],
        out_specs=[
            pl.BlockSpec((TM, Cp), lambda i: (i, 0)),
            pl.BlockSpec((8, Cp), lambda i: (i, 0)),
        ],
        out_shape=[
            jax.ShapeDtypeStruct((M_pad, Cp), jnp.bfloat16),   # bf16 y stream
            jax.ShapeDtypeStruct((G * 8, Cp), jnp.float32),    # packed stats
        ],
        compiler_params=pltpu.CompilerParams(
            dimension_semantics=("parallel",),
            vmem_limit_bytes=vmem_limit),
    )(x_im2col, w2, b2)

    # ---- combine partials + fold BN into per-channel scale/shift (tiny) ----
    stats = stats.reshape(G, 8, Cp)
    s = stats[:, 0, :].sum(axis=0)                     # (Cp,) channel sum
    ss = stats[:, 4, :].sum(axis=0)                    # (Cp,) channel sumsq
    mean = s / M
    var = jnp.maximum(ss / M - mean * mean, 0.0)       # biased (training) var
    scale1 = g1 * jax.lax.rsqrt(var + eps)
    shift1 = be1 - mean * scale1
    scale = scale1.reshape(1, Cp)
    shift = shift1.reshape(1, Cp)

    # ---- phase 2: fused affine  out = y * scale + shift ----
    out2d = pl.pallas_call(
        _bn_affine_kernel,
        grid=(G2,),
        in_specs=[
            pl.BlockSpec((TM2, Cp), lambda i: (i, 0)),
            pl.BlockSpec((1, Cp), lambda i: (0, 0),
                         pipeline_mode=pl.Buffered(1)),
            pl.BlockSpec((1, Cp), lambda i: (0, 0),
                         pipeline_mode=pl.Buffered(1)),
        ],
        out_specs=pl.BlockSpec((TM2, Cp), lambda i: (i, 0)),
        out_shape=jax.ShapeDtypeStruct((M_pad, Cp), jnp.float32),
        compiler_params=pltpu.CompilerParams(
            dimension_semantics=("parallel",),
            vmem_limit_bytes=vmem_limit),
    )(y, scale, shift)

    out = out2d[:M, :C_out].reshape(N, L_out, C_out)
    return jnp.transpose(out, (0, 2, 1)).astype(x_ncl.dtype)           # (N, C_out, L_out)


def _reference(x, weight, bias, gamma, beta, *, padding, dilation, eps=1e-5):
    """Pure-JAX f32 reference mirroring the PyTorch module (training-mode BN)."""
    conv = jax.lax.conv_general_dilated(
        x, weight, window_strides=(1,), padding=[(padding, padding)],
        rhs_dilation=(dilation,), dimension_numbers=("NCH", "OIH", "NCH"))
    conv = conv + bias[None, :, None]
    y = jnp.maximum(conv, 0.0)
    mean = jnp.mean(y, axis=(0, 2), keepdims=True)
    var = jnp.mean((y - mean) ** 2, axis=(0, 2), keepdims=True)
    y_hat = (y - mean) * jax.lax.rsqrt(var + eps)
    return y_hat * gamma[None, :, None] + beta[None, :, None]


if __name__ == "__main__":
    key = jax.random.PRNGKey(0)
    configs = [
        dict(N=2, C_in=16, C_out=32, L=16, K=3, padding=1, dilation=1),
        dict(N=4, C_in=16, C_out=32, L=128, K=3, padding=2, dilation=2),
        dict(N=2, C_in=32, C_out=80, L=40, K=1, padding=0, dilation=1),
        dict(N=1, C_in=8, C_out=24, L=13, K=3, padding=0, dilation=1),  # M % 8 != 0 -> masked pad rows
    ]
    for cfg in configs:
        key, kx, kw, kb, kg, kbe = jax.random.split(key, 6)
        x = jax.random.normal(kx, (cfg["N"], cfg["C_in"], cfg["L"]), jnp.float32)
        w = jax.random.normal(kw, (cfg["C_out"], cfg["C_in"], cfg["K"]),
                              jnp.float32) * 0.1
        b = jax.random.normal(kb, (cfg["C_out"],), jnp.float32) * 0.1
        g = 1.0 + 0.1 * jax.random.normal(kg, (cfg["C_out"],), jnp.float32)
        be = 0.1 * jax.random.normal(kbe, (cfg["C_out"],), jnp.float32)

        out = conv1d_relu_bn(x, w, b, g, be,
                             padding=cfg["padding"], dilation=cfg["dilation"])
        out = jax.block_until_ready(out)

        ref = _reference(x, w, b, g, be,
                         padding=cfg["padding"], dilation=cfg["dilation"])
        # bf16 MXU operands + bf16 intermediate y (f32 accumulation / BN math)
        # -> loosened tolerance vs the f32 reference.
        np.testing.assert_allclose(np.asarray(out), np.asarray(ref),
                                   rtol=3e-2, atol=3e-2)

    print("KERNEL_OK")
</pallas_src>

<mosaic_0001>
module attributes {stable_mosaic.version = 11 : i64} {
  func.func @kernel(%arg0: i32, %arg1: memref<32x48xbf16, #tpu.memory_space<vmem>>, %arg2: memref<48x128xbf16, #tpu.memory_space<vmem>>, %arg3: memref<1x128xf32, #tpu.memory_space<vmem>>, %arg4: memref<32x128xbf16, #tpu.memory_space<vmem>>, %arg5: memref<8x128xf32, #tpu.memory_space<vmem>>) attributes {dimension_semantics = [#tpu.dimension_semantics<parallel>], iteration_bounds = array<i64: 1>, scalar_prefetch = 0 : i64, scratch_operands = 0 : i64, tpu.core_type = #tpu.core_type<tc>, window_params = [{transform_indices = @transform_0, window_bounds = array<i64: 32, 48>}, {pipeline_mode = #tpu.pipeline_mode<synchronous>, transform_indices = @transform_1, window_bounds = array<i64: 48, 128>}, {pipeline_mode = #tpu.pipeline_mode<synchronous>, transform_indices = @transform_2, window_bounds = array<i64: 1, 128>}, {transform_indices = @transform_3, window_bounds = array<i64: 32, 128>}, {transform_indices = @transform_4, window_bounds = array<i64: 8, 128>}]} {
    %c0 = arith.constant 0 : index
    %c0_0 = arith.constant 0 : index
    %0 = vector.load %arg1[%c0, %c0_0] : memref<32x48xbf16, #tpu.memory_space<vmem>>, vector<32x48xbf16>
    %c0_1 = arith.constant 0 : index
    %c0_2 = arith.constant 0 : index
    %1 = vector.load %arg2[%c0_1, %c0_2] : memref<48x128xbf16, #tpu.memory_space<vmem>>, vector<48x128xbf16>
    %cst = arith.constant dense<0.000000e+00> : vector<32x128xf32>
    %2 = tpu.matmul %0, %1, %cst {dimension_numbers = #tpu.dot_dimension_numbers<[1], [0], [0], [1], [0, 0, 1, 1], [], []>} : vector<32x48xbf16>, vector<48x128xbf16>, vector<32x128xf32> -> vector<32x128xf32>
    %c0_3 = arith.constant 0 : index
    %c0_4 = arith.constant 0 : index
    %3 = vector.load %arg3[%c0_3, %c0_4] : memref<1x128xf32, #tpu.memory_space<vmem>>, vector<1x128xf32>
    %4 = vector.broadcast %3 : vector<1x128xf32> to vector<32x128xf32>
    %5 = arith.addf %2, %4 : vector<32x128xf32>
    %cst_5 = arith.constant 0.000000e+00 : f32
    %6 = vector.broadcast %cst_5 : f32 to vector<32x128xf32>
    %7 = arith.maximumf %5, %6 : vector<32x128xf32>
    %8 = arith.truncf %7 : vector<32x128xf32> to vector<32x128xbf16>
    %c0_6 = arith.constant 0 : index
    %c0_7 = arith.constant 0 : index
    %9 = vector.load %arg4[%c0_6, %c0_7] : memref<32x128xbf16, #tpu.memory_space<vmem>>, vector<32x128xbf16>
    tpu.vector_store %arg4[%c0_6, %c0_7], %8 {strides = array<i32>} : memref<32x128xbf16, #tpu.memory_space<vmem>>, vector<32x128xbf16>,
    %10 = arith.extf %8 : vector<32x128xbf16> to vector<32x128xf32>
    %cst_8 = arith.constant dense<0.000000e+00> : vector<128xf32>
    %11 = vector.multi_reduction <add>, %10, %cst_8 [0] : vector<32x128xf32> to vector<128xf32>
    %12 = vector.shape_cast %11 : vector<128xf32> to vector<1x128xf32>
    %13 = arith.mulf %10, %10 : vector<32x128xf32>
    %cst_9 = arith.constant dense<0.000000e+00> : vector<128xf32>
    %14 = vector.multi_reduction <add>, %13, %cst_9 [0] : vector<32x128xf32> to vector<128xf32>
    %15 = vector.shape_cast %14 : vector<128xf32> to vector<1x128xf32>
    %16 = tpu.iota {dimensions = array<i32: 0>} : vector<8x128xi32>
    %c4_i32 = arith.constant 4 : i32
    %17 = vector.broadcast %c4_i32 : i32 to vector<8x128xi32>
    %18 = arith.cmpi slt, %16, %17 : vector<8x128xi32>
    %19 = vector.shape_cast %12 : vector<1x128xf32> to vector<1x128xf32>
    %20 = vector.broadcast %19 : vector<1x128xf32> to vector<8x128xf32>
    %21 = vector.shape_cast %15 : vector<1x128xf32> to vector<1x128xf32>
    %22 = vector.broadcast %21 : vector<1x128xf32> to vector<8x128xf32>
    %23 = arith.select %18, %20, %22 : vector<8x128xi1>, vector<8x128xf32>
    %c0_10 = arith.constant 0 : index
    %c0_11 = arith.constant 0 : index
    %24 = vector.load %arg5[%c0_10, %c0_11] : memref<8x128xf32, #tpu.memory_space<vmem>>, vector<8x128xf32>
    tpu.vector_store %arg5[%c0_10, %c0_11], %23 {strides = array<i32>} : memref<8x128xf32, #tpu.memory_space<vmem>>, vector<8x128xf32>,
    return
  }
  func.func @transform_0(%arg0: i32) -> (i32, i32) {
    %c0_i32 = arith.constant 0 : i32
    %c0_i32_0 = arith.constant 0 : i32
    return %arg0, %c0_i32 : i32, i32
  }
  func.func @transform_1(%arg0: i32) -> (i32, i32) {
    %c0_i32 = arith.constant 0 : i32
    %c0_i32_0 = arith.constant 0 : i32
    %c0_i32_1 = arith.constant 0 : i32
    return %c0_i32, %c0_i32_0 : i32, i32
  }
  func.func @transform_2(%arg0: i32) -> (i32, i32) {
    %c0_i32 = arith.constant 0 : i32
    %c0_i32_0 = arith.constant 0 : i32
    %c0_i32_1 = arith.constant 0 : i32
    return %c0_i32, %c0_i32_0 : i32, i32
  }
  func.func @transform_3(%arg0: i32) -> (i32, i32) {
    %c0_i32 = arith.constant 0 : i32
    %c0_i32_0 = arith.constant 0 : i32
    return %arg0, %c0_i32 : i32, i32
  }
  func.func @transform_4(%arg0: i32) -> (i32, i32) {
    %c0_i32 = arith.constant 0 : i32
    %c0_i32_0 = arith.constant 0 : i32
    return %arg0, %c0_i32 : i32, i32
  }
}

</mosaic_0001>

<llo_original>
// kernel: tpu_custom_call.1
$region0: #{tpu_custom_call.1}
  #allocation0 [shape = 'u32[]', space=smem, size = 0x4, offset = 0x4, fixed_abs, tag = 'smem constant byte address 0x4 - core index']
  #allocation1 [shape = 'u32[144,128]{1,0:T(1,128)}', space=vmem, size = 0x12000, scoped, tag = 'internal scratch']
  %s0 = inlined_call_operand.hbm [shape: bf16[32,48], index: 0, kind: input, shape index: {}]
  %s1 = inlined_call_operand.hbm [shape: bf16[48,128], index: 1, kind: input, shape index: {}]
  %s2 = inlined_call_operand.vmem [shape: f32[1,128], index: 2, kind: input, shape index: {}]
  %s3 = inlined_call_operand.hbm [shape: bf16[32,128], index: 3, kind: output, shape index: {0}]
  %s4 = inlined_call_operand.hbm [shape: f32[8,128], index: 4, kind: output, shape index: {1}]
  %5 = xla_tuple %s3, %s4
  %s6 = sld [smem:[#allocation0]]
  $region38: #{tpu_custom_call.1} parent=0
    _
  %s8 = ssub.s32 1, %s6
  %s9 = scalar_select 0, %s8, %s6
  $region1: #{tpu_custom_call.1} parent=0
    #allocation2 [shape = 'u8[8192]{0}', space=vmem, size = 0x2000, scoped, tag = 'input window, operand 0, single buffered']
    #allocation3 [shape = 's32[1]{0}', space=sflag, size = 0x4, scoped, tag = 'scoped memory for tpu_custom_call.1']
    #allocation4 [shape = 's32[1]{0}', space=sflag, size = 0x4, scoped, tag = 'scoped memory for tpu_custom_call.1']
    #allocation5 [shape = 'u8[12288]{0}', space=vmem, size = 0x3000, scoped, tag = 'input window, operand 1, single buffered']
    #allocation6 [shape = 's32[1]{0}', space=sflag, size = 0x4, scoped, tag = 'scoped memory for tpu_custom_call.1']
    #allocation7 [shape = 'u8[8192]{0}', space=vmem, size = 0x2000, scoped, tag = 'output window, operand 0, single buffered']
    #allocation8 [shape = 'u8[4096]{0}', space=vmem, size = 0x1000, scoped, tag = 'output window, operand 1, single buffered']
    #allocation9 [shape = 's32[1]{0}', space=sflag, size = 0x4, scoped, tag = 'scoped memory for tpu_custom_call.1']
    %10 = vsyncpa [#allocation3], 0
    %11 = vsyncpa [#allocation6], 0
    %12 = vsyncpa [#allocation4], 0
    %13 = vsyncpa [#allocation9], 0
    // Predicated region
    $region2: #{tpu_custom_call.1} parent=1 // pred_check
      _
    $region3: #{tpu_custom_call.1} parent=1 // pred_check_branch
      %15 = sbr.rel (0) target = $region5
    $region4: #{tpu_custom_call.1} parent=1 // pred_region
      %s17 = ssub.s32 256, 256
      %18 = vsyncadd [#allocation3], %s17
      %s19 = sshll.u32 [#allocation2], 4
      %s20 = int_to_ptr.vmem [resolvable:$true] %s19
      %25 = dma.hbm_to_vmem [thread:$0]  %s0, 256, %s20, [#allocation3], 64, 64, 4
    $region5: #{tpu_custom_call.1} parent=1 // pred_fallthru
      _
    // Predicated region
    $region6: #{tpu_custom_call.1} parent=1 // pred_check
      _
    $region7: #{tpu_custom_call.1} parent=1 // pred_check_branch
      %27 = sbr.rel (0) target = $region9
    $region8: #{tpu_custom_call.1} parent=1 // pred_region
      %s29 = ssub.s32 384, 384
      %30 = vsyncadd [#allocation6], %s29
      %s31 = sshll.u32 [#allocation5], 4
      %s32 = int_to_ptr.vmem [resolvable:$true] %s31
      %37 = dma.hbm_to_vmem [thread:$0]  %s1, 384, %s32, [#allocation6], 64, 64, 4
    $region9: #{tpu_custom_call.1} parent=1 // pred_fallthru
      _
    // Predicated region
    $region10: #{tpu_custom_call.1} parent=1 // pred_check
      _
    $region11: #{tpu_custom_call.1} parent=1 // pred_check_branch
      %39 = sbr.rel (0) target = $region13
    $region12: #{tpu_custom_call.1} parent=1 // pred_region
      _
    $region13: #{tpu_custom_call.1} parent=1 // pred_fallthru
      _
    // Predicated region
    $region14: #{tpu_custom_call.1} parent=1 // pred_check
      _
    $region15: #{tpu_custom_call.1} parent=1 // pred_check_branch
      %41 = sbr.rel (0) target = $region17
    $region16: #{tpu_custom_call.1} parent=1 // pred_region
      %42 = dma.done [#allocation3], 256
    $region17: #{tpu_custom_call.1} parent=1 // pred_fallthru
      _
    // Predicated region
    $region18: #{tpu_custom_call.1} parent=1 // pred_check
      _
    $region19: #{tpu_custom_call.1} parent=1 // pred_check_branch
      %44 = sbr.rel (0) target = $region21
    $region20: #{tpu_custom_call.1} parent=1 // pred_region
      %45 = dma.done [#allocation6], 384
    $region21: #{tpu_custom_call.1} parent=1 // pred_fallthru
      _
    %v47 = vld [vmem:[#allocation2] sm:$0xf]
    %v48 = vld [vmem:[#allocation2 + $0x4] sm:$0xf]
    %v49 = vld [vmem:[#allocation2 + $0x8] sm:$0xf]
    %v50 = vld [vmem:[#allocation2 + $0xc] sm:$0xf]
    %v51 = vld [vmem:[#allocation5] sm:$0xf]
    %v52 = vld [vmem:[#allocation5 + $0x4] sm:$0xf]
    %v53 = vld [vmem:[#allocation5 + $0x8] sm:$0xf]
    %v54 = vld [vmem:[#allocation5 + $0xc] sm:$0xf]
    %v55 = vld [vmem:[#allocation5 + $0x10] sm:$0xf]
    %v56 = vld [vmem:[#allocation5 + $0x14] sm:$0xf]
    %v57 = vld [vmem:[%s2] sm:$0x1]
    %v59 = vlaneseq
    %v60 = vshrl.u32 %v59, 7
    %v61 = vsub.s32 0, %v60
    %v62 = vrot.slane %v57, %v61
    %v68 = vunpack.c.l.b16 %v47
    %v69 = vunpack.c.l.b16 %v48
    %v70 = vunpack.c.l.b16 %v49
    %v71 = vunpack.c.l.b16 %v50
    %v72 = vpack.c.b16 %v69, %v68
    %v73 = vpack.c.b16 %v71, %v70
    %v80 = vunpack.c.l.b16 %v51
    %v81 = vunpack.c.l.b16 %v52
    %v82 = vunpack.c.l.b16 %v53
    %v83 = vunpack.c.l.b16 %v54
    %v84 = vunpack.c.l.b16 %v55
    %v85 = vunpack.c.l.b16 %v56
    %v86 = vpack.c.b16 %v81, %v80
    %v87 = vpack.c.b16 %v83, %v82
    %v88 = vpack.c.b16 %v85, %v84
    %vm92 = vcmask 392192
    %v94 = vsel %vm92, %v72, 0
    %v97 = vsel %vm92, %v73, 0
    %99 = vmatprep.subr.bf16.mxu0 0
    %100 = vmatpush1.bf16.msra.mxu0 %v86
    %101 = vmatprep.subr.bf16.mxu0 0
    %102 = vmatpush1.bf16.msra.mxu0 %v87
    %103 = vmatprep.subr.bf16.mxu0 0
    %104 = vmatpush1.bf16.msra.mxu0 %v88
    %105 = vmatprep.subr.bf16.mxu0 0
    %106 = vmatpush1.bf16.msra.mxu0 0
    %107 = vmatprep.subr.bf16.mxu0 0
    %108 = vmatpush1.bf16.msra.mxu0 0
    %109 = vmatprep.subr.bf16.mxu0 0
    %110 = vmatpush1.bf16.msra.mxu0 0
    %111 = vmatprep.subr.bf16.mxu0 0
    %112 = vmatpush1.bf16.msra.mxu0 0
    %113 = vmatprep.subr.bf16.mxu0 0
    %114 = vmatpush1.bf16.msra.mxu0 0
    %115 = vmatprep.subr.bf16.mxu0 0
    %116 = vmatpush1.bf16.msra.mxu0 0
    %117 = vmatprep.subr.bf16.mxu0 0
    %118 = vmatpush1.bf16.msra.mxu0 0
    %119 = vmatprep.subr.bf16.mxu0 0
    %120 = vmatpush1.bf16.msra.mxu0 0
    %121 = vmatprep.subr.bf16.mxu0 0
    %122 = vmatpush1.bf16.msra.mxu0 0
    %123 = vmatprep.subr.bf16.mxu0 0
    %124 = vmatpush1.bf16.msra.mxu0 0
    %125 = vmatprep.subr.bf16.mxu0 0
    %126 = vmatpush1.bf16.msra.mxu0 0
    %127 = vmatprep.subr.bf16.mxu0 0
    %128 = vmatpush1.bf16.msra.mxu0 0
    %129 = vmatprep.subr.bf16.mxu0 0
    %130 = vmatpush1.bf16.msra.mxu0 0
    %131 = vmatprep.mubr.bf16.mxu0 0
    %132 = vmatmul.mubr.bf16.gmra.mrb[0].mxu0 %v94
    %v133 = vpop.f32.mrb[0].mxu0
    %v134 = vadd.f32 %v62, %v133
    %v135 = vpop.f32.mrb[0].mxu0
    %v136 = vpop.f32.mrb[0].mxu0
    %v137 = vadd.f32 %v62, %v136
    %v138 = vpop.f32.mrb[0].mxu0
    %139 = vmatprep.mubr.bf16.mxu0 0
    %140 = vmatmul.mubr.bf16.gmra.mrb[0].mxu0 %v97
    %v141 = vpop.f32.mrb[0].mxu0
    %v142 = vadd.f32 %v62, %v141
    %v143 = vpop.f32.mrb[0].mxu0
    %v144 = vpop.f32.mrb[0].mxu0
    %v145 = vadd.f32 %v62, %v144
    %v146 = vpop.f32.mrb[0].mxu0
    %147 = vdwg.mxu0
    %v148 = vmax.f32 %v134, 0.0
    %v149 = vmax.f32 %v137, 0.0
    %v150 = vmax.f32 %v142, 0.0
    %v151 = vmax.f32 %v145, 0.0
    %v152 = vpack.c.bf16 %v149, %v148
    %v153 = vpack.c.bf16 %v151, %v150
    %v156 = vunpack.c.l.b16 %v152
    %v157 = vunpack.c.h.b16 %v152
    %v158 = vunpack.c.l.b16 %v153
    %v159 = vunpack.c.h.b16 %v153
    %v160 = vpack.c.b16 %v156, %v156
    %v161 = vpack.c.b16 %v157, %v157
    %v162 = vpack.c.b16 %v158, %v158
    %v163 = vpack.c.b16 %v159, %v159
    %168 = vst [vmem:[#allocation7] sm:$0xf] %v160
    %169 = vst [vmem:[#allocation7 + $0x4] sm:$0xf] %v161
    %170 = vst [vmem:[#allocation7 + $0x8] sm:$0xf] %v162
    %171 = vst [vmem:[#allocation7 + $0xc] sm:$0xf] %v163
    %v172 = vunpack.c.l.bf16 %v152
    %v173 = vunpack.c.h.bf16 %v152
    %v174 = vunpack.c.l.bf16 %v153
    %v175 = vunpack.c.h.bf16 %v153
    %v176 = vadd.f32 %v172, %v173
    %v177 = vadd.f32 %v176, %v174
    %v178 = vadd.f32 %v177, %v175
    %v179 = vrot.slane %v178, 4
    %v180 = vadd.f32 %v178, %v179
    %v181 = vrot.slane %v180, 2
    %v182 = vadd.f32 %v180, %v181
    %v183 = vrot.slane %v182, 1
    %v184 = vadd.f32 %v182, %v183
    %v185 = vmul.f32 %v172, %v172
    %v186 = vmul.f32 %v173, %v173
    %v187 = vmul.f32 %v174, %v174
    %v188 = vmul.f32 %v175, %v175
    %v189 = vadd.f32 %v185, %v186
    %v190 = vadd.f32 %v189, %v187
    %v191 = vadd.f32 %v190, %v188
    %v192 = vrot.slane %v191, 4
    %v193 = vadd.f32 %v191, %v192
    %v194 = vrot.slane %v193, 2
    %v195 = vadd.f32 %v193, %v194
    %v196 = vrot.slane %v195, 1
    %v197 = vadd.f32 %v195, %v196
    %v198 = vlaneseq
    %v199 = vshrl.u32 %v198, 7
    %vm200 = vcmp.lt.s32.totalorder %v199, 4
    %v201 = vsel %vm200, %v184, %v197
    %202 = vst [vmem:[#allocation8] sm:$0xff] %v201
    // Predicated region
    $region22: #{tpu_custom_call.1} parent=1 // pred_check
      _
    $region23: #{tpu_custom_call.1} parent=1 // pred_check_branch
      %204 = sbr.rel (0) target = $region25
    $region24: #{tpu_custom_call.1} parent=1 // pred_region
      %s206 = ssub.s32 256, 256
      %207 = vsyncadd [#allocation4], %s206
      %s208 = sshll.u32 [#allocation7], 4
      %s209 = int_to_ptr.vmem [resolvable:$true] %s208
      %214 = dma.vmem_to_hbm [thread:$0]  %s209, 256, %s3, [#allocation4], 64, 64, 4
    $region25: #{tpu_custom_call.1} parent=1 // pred_fallthru
      _
    // Predicated region
    $region26: #{tpu_custom_call.1} parent=1 // pred_check
      _
    $region27: #{tpu_custom_call.1} parent=1 // pred_check_branch
      %216 = sbr.rel (0) target = $region29
    $region28: #{tpu_custom_call.1} parent=1 // pred_region
      %s218 = ssub.s32 128, 128
      %219 = vsyncadd [#allocation9], %s218
      %s221 = sshll.u32 [#allocation8], 4
      %s222 = int_to_ptr.vmem [resolvable:$true] %s221
      %224 = dma.vmem_to_hbm [thread:$0]  %s222, 128, %s4, [#allocation9]
    $region29: #{tpu_custom_call.1} parent=1 // pred_fallthru
      _
    // Predicated region
    $region30: #{tpu_custom_call.1} parent=1 // pred_check
      _
    $region31: #{tpu_custom_call.1} parent=1 // pred_check_branch
      %226 = sbr.rel (0) target = $region33
    $region32: #{tpu_custom_call.1} parent=1 // pred_region
      %227 = dma.done [#allocation4], 256
    $region33: #{tpu_custom_call.1} parent=1 // pred_fallthru
      _
    // Predicated region
    $region34: #{tpu_custom_call.1} parent=1 // pred_check
      _
    $region35: #{tpu_custom_call.1} parent=1 // pred_check_branch
      %229 = sbr.rel (0) target = $region37
    $region36: #{tpu_custom_call.1} parent=1 // pred_region
      %230 = dma.done [#allocation9], 128
    $region37: #{tpu_custom_call.1} parent=1 // pred_fallthru
      _
    %231 = vsyncpa [#allocation3], 1
    %232 = vsyncpa [#allocation6], 1
    %233 = vsyncpa [#allocation4], 1
    %234 = vsyncpa [#allocation9], 1

</llo_original>
